<compile_context>
chip_gen: v7x
topology: tpu7x:2x2x1
jax: 0.10.0
libtpu: 0.0.40
codegen_flags: <defaults>
</compile_context>

<pallas_src>
import jax
import jax.numpy as jnp
from jax import lax
from jax.experimental import pallas as pl
from jax.experimental.pallas import tpu as pltpu

_LANE = 128
_BLOCK_BYTES_PER_INPUT = 4 * 1024 * 1024   # ~4 MiB of each input per grid step
_VMEM_LIMIT_CAP = 48 * 1024 * 1024         # safe on v7x (64 MiB physical) and below
_MAX_CHUNKS_MULTI_TC = 2                   # outer "parallel" axis for 2-TC chips


def _round_up(x, m):
    return ((x + m - 1) // m) * m


def _cdiv(a, b):
    return -(-a // b)


def _num_tensorcores() -> int:
    """Best-effort TensorCore count of the local chip (2 on v7x/v4/v5p, else 1)."""
    try:
        kind = jax.devices()[0].device_kind.lower()
    except Exception:
        return 1
    if "v7" in kind or "v4" in kind or "v5p" in kind:
        return 2
    return 1


def _make_sse_kernel(tile_rows, rows_total, steps_per_chunk, need_mask):
    groups = tile_rows // 8

    def kernel(pred_ref, targ_ref, out_ref, acc_ref):
        k = pl.program_id(1)

        @pl.when(k == 0)
        def _():
            acc_ref[...] = jnp.zeros_like(acc_ref)

        d = pred_ref[...].astype(jnp.float32) - targ_ref[...].astype(jnp.float32)
        sq = d * d

        def accumulate(x):
            # (tile_rows,128) -> (tile_rows//8, 8, 128) is a free vreg regrouping; the
            # axis-0 sum is cross-vreg VALU adds (no XLU) into the tiny accumulator.
            acc_ref[...] += jnp.sum(x.reshape(groups, 8, _LANE), axis=0)

        if need_mask:
            tile_idx = pl.program_id(0) * steps_per_chunk + k
            row_start = tile_idx * tile_rows
            in_range = row_start + tile_rows <= rows_total

            @pl.when(in_range)          # hot path: no mask work at all
            def _():
                accumulate(sq)

            @pl.when(jnp.logical_not(in_range))   # cold path: ragged / clamped tile
            def _():
                row_ids = row_start + lax.broadcasted_iota(
                    jnp.int32, (tile_rows, _LANE), 0)
                accumulate(jnp.where(row_ids < rows_total, sq, jnp.float32(0.0)))
        else:
            accumulate(sq)

        @pl.when(k == pl.num_programs(1) - 1)
        def _():
            # Single cross-lane/sublane reduction per chunk, paid once.
            out_ref[0, 0] = jnp.sum(acc_ref[...])

    return kernel


def _sse_pallas(pred2d, targ2d, rows):
    """Sum of squared error over a lane-dense (rows, 128) pair via Pallas."""
    itemsize_p = jnp.dtype(pred2d.dtype).itemsize
    itemsize_t = jnp.dtype(targ2d.dtype).itemsize

    # Sublane packing of the narrowest dtype (f32 -> 8, bf16 -> 16, int8/fp8 -> 32).
    row_mult = max(8, 32 // max(min(itemsize_p, itemsize_t), 1))
    # Dtype-aware row budget: ~4 MiB of each input per grid step.
    budget_rows = _BLOCK_BYTES_PER_INPUT // (_LANE * max(itemsize_p, itemsize_t))
    budget_rows = max(row_mult, (budget_rows // row_mult) * row_mult)
    tile_rows = min(budget_rows, _round_up(rows, row_mult))

    n_tiles = _cdiv(rows, tile_rows)
    n_chunks = min(_MAX_CHUNKS_MULTI_TC if _num_tensorcores() > 1 else 1, n_tiles)
    steps = _cdiv(n_tiles, n_chunks)
    # Mask needed iff some grid tile covers rows beyond the real data
    # (ragged last tile and/or one clamped out-of-range tile on one chunk).
    need_mask = (n_chunks * steps * tile_rows) != rows

    def in_index(c, k):
        # Clamp fully-out-of-range tiles onto the last valid tile; their contribution
        # is zeroed by the in-kernel mask (at most one such tile, on one chunk only).
        t = jnp.minimum(c * steps + k, n_tiles - 1)
        return (t, 0)

    kernel = _make_sse_kernel(tile_rows, rows, steps, need_mask)

    # Double-buffered input blocks + tiny accumulator, with headroom; capped for v7x.
    block_bytes = tile_rows * _LANE * (itemsize_p + itemsize_t)
    vmem_limit = int(min(_VMEM_LIMIT_CAP, max(32 << 20, 2 * block_bytes + (4 << 20))))

    n_elems = rows * _LANE
    cost = pl.CostEstimate(
        flops=3 * n_elems, transcendentals=0,
        bytes_accessed=n_elems * (itemsize_p + itemsize_t) + 4 * n_chunks)

    partials = pl.pallas_call(
        kernel,
        out_shape=jax.ShapeDtypeStruct((n_chunks, 1), jnp.float32),
        grid_spec=pltpu.PrefetchScalarGridSpec(
            num_scalar_prefetch=0,
            grid=(n_chunks, steps),
            in_specs=[
                pl.BlockSpec((tile_rows, _LANE), in_index),
                pl.BlockSpec((tile_rows, _LANE), in_index),
            ],
            out_specs=pl.BlockSpec((1, 1), lambda c, k: (c, 0),
                                   memory_space=pltpu.SMEM),
            scratch_shapes=[pltpu.VMEM((8, _LANE), jnp.float32)],
        ),
        compiler_params=pltpu.CompilerParams(
            dimension_semantics=("parallel", "arbitrary"),
            vmem_limit_bytes=vmem_limit),
        cost_estimate=cost,
    )(pred2d, targ2d)

    return jnp.sum(partials)


def keypoint_loss(prediction: jax.Array, target: jax.Array) -> jax.Array:
    """Pallas equivalent of KeypointLoss.forward == torch.nn.MSELoss()(pred, target)."""
    assert prediction.shape == target.shape, "MSELoss requires matching shapes"
    out_dtype = jnp.result_type(prediction.dtype, target.dtype)
    n = prediction.size

    pred_flat = prediction.reshape(-1)   # row-major flatten: free for contiguous arrays
    targ_flat = target.reshape(-1)

    rows = n // _LANE
    n_aligned = rows * _LANE
    tail = n - n_aligned

    # <128-element tail (only for unaligned n): tiny plain-jnp reduction, no HBM pad copy.
    tail_sse = jnp.float32(0.0)
    if tail:
        dt = (pred_flat[n_aligned:].astype(jnp.float32)
              - targ_flat[n_aligned:].astype(jnp.float32))
        tail_sse = jnp.sum(dt * dt)

    if rows == 0:
        total = tail_sse
    else:
        if tail:
            pred_head, targ_head = pred_flat[:n_aligned], targ_flat[:n_aligned]
        else:
            pred_head, targ_head = pred_flat, targ_flat
        total = _sse_pallas(pred_head.reshape(rows, _LANE),
                            targ_head.reshape(rows, _LANE), rows) + tail_sse

    # Mean over the true element count.
    return (total / jnp.float32(n)).astype(out_dtype)


if __name__ == "__main__":
    key = jax.random.PRNGKey(0)
    kp, kt = jax.random.split(key)
    # Keypoint-heatmap-ish shapes: batch=2, keypoint channels=4, spatial 16x16 (NCHW).
    prediction = jax.random.normal(kp, (2, 4, 16, 16), dtype=jnp.float32)
    target = jax.random.normal(kt, (2, 4, 16, 16), dtype=jnp.float32)

    loss = keypoint_loss(prediction, target)
    jax.block_until_ready(loss)

    # Reference check against plain JAX mean-squared-error.
    ref = jnp.mean((prediction - target) ** 2)
    assert jnp.allclose(loss, ref, rtol=1e-5, atol=1e-6), (loss, ref)

    print("KERNEL_OK")
</pallas_src>

<mosaic_0001>
module attributes {stable_mosaic.version = 11 : i64} {
  func.func @kernel(%arg0: i32, %arg1: i32, %arg2: memref<16x128xf32, #tpu.memory_space<vmem>>, %arg3: memref<16x128xf32, #tpu.memory_space<vmem>>, %arg4: memref<1x1xf32, #tpu.memory_space<smem>>, %arg5: memref<8x128xf32, #tpu.memory_space<vmem>>) attributes {dimension_semantics = [#tpu.dimension_semantics<parallel>, #tpu.dimension_semantics<arbitrary>], iteration_bounds = array<i64: 1, 1>, scalar_prefetch = 0 : i64, scratch_operands = 1 : i64, tpu.core_type = #tpu.core_type<tc>, window_params = [{transform_indices = @transform_0, window_bounds = array<i64: 16, 128>}, {transform_indices = @transform_1, window_bounds = array<i64: 16, 128>}, {transform_indices = @transform_2, window_bounds = array<i64: 1, 1>}]} {
    %c0_i32 = arith.constant 0 : i32
    %0 = arith.cmpi eq, %arg1, %c0_i32 : i32
    %1 = arith.extui %0 : i1 to i32
    %c0_i32_0 = arith.constant 0 : i32
    %2 = arith.cmpi ne, %1, %c0_i32_0 : i32
    scf.if %2 {
      %cst_10 = arith.constant 0.000000e+00 : f32
      %15 = vector.broadcast %cst_10 : f32 to vector<8x128xf32>
      %c0_11 = arith.constant 0 : index
      %c0_12 = arith.constant 0 : index
      %16 = vector.load %arg5[%c0_11, %c0_12] : memref<8x128xf32, #tpu.memory_space<vmem>>, vector<8x128xf32>
      tpu.vector_store %arg5[%c0_11, %c0_12], %15 {strides = array<i32>} : memref<8x128xf32, #tpu.memory_space<vmem>>, vector<8x128xf32>,
    } else {
    }
    %c0 = arith.constant 0 : index
    %c0_1 = arith.constant 0 : index
    %3 = vector.load %arg2[%c0, %c0_1] : memref<16x128xf32, #tpu.memory_space<vmem>>, vector<16x128xf32>
    %c0_2 = arith.constant 0 : index
    %c0_3 = arith.constant 0 : index
    %4 = vector.load %arg3[%c0_2, %c0_3] : memref<16x128xf32, #tpu.memory_space<vmem>>, vector<16x128xf32>
    %5 = arith.subf %3, %4 : vector<16x128xf32>
    %6 = arith.mulf %5, %5 : vector<16x128xf32>
    %c0_4 = arith.constant 0 : index
    %c0_5 = arith.constant 0 : index
    %7 = vector.load %arg5[%c0_4, %c0_5] : memref<8x128xf32, #tpu.memory_space<vmem>>, vector<8x128xf32>
    %8 = vector.shape_cast %6 : vector<16x128xf32> to vector<2x8x128xf32>
    %cst = arith.constant dense<0.000000e+00> : vector<8x128xf32>
    %9 = vector.multi_reduction <add>, %8, %cst [0] : vector<2x8x128xf32> to vector<8x128xf32>
    %10 = arith.addf %7, %9 : vector<8x128xf32>
    %c0_6 = arith.constant 0 : index
    %c0_7 = arith.constant 0 : index
    %11 = vector.load %arg5[%c0_6, %c0_7] : memref<8x128xf32, #tpu.memory_space<vmem>>, vector<8x128xf32>
    tpu.vector_store %arg5[%c0_6, %c0_7], %10 {strides = array<i32>} : memref<8x128xf32, #tpu.memory_space<vmem>>, vector<8x128xf32>,
    %c0_i32_8 = arith.constant 0 : i32
    %12 = arith.cmpi eq, %arg1, %c0_i32_8 : i32
    %13 = arith.extui %12 : i1 to i32
    %c0_i32_9 = arith.constant 0 : i32
    %14 = arith.cmpi ne, %13, %c0_i32_9 : i32
    scf.if %14 {
      %c0_10 = arith.constant 0 : index
      %c0_11 = arith.constant 0 : index
      %15 = vector.load %arg5[%c0_10, %c0_11] : memref<8x128xf32, #tpu.memory_space<vmem>>, vector<8x128xf32>
      %16 = vector.shape_cast %15 : vector<8x128xf32> to vector<1x8x128xf32>
      %cst_12 = arith.constant dense<0.000000e+00> : vector<1xf32>
      %17 = vector.multi_reduction <add>, %16, %cst_12 [1, 2] : vector<1x8x128xf32> to vector<1xf32>
      %18 = vector.shape_cast %17 : vector<1xf32> to vector<1x1x1xf32>
      %19 = vector.extract %18[0, 0, 0] : f32 from vector<1x1x1xf32>
      %c0_13 = arith.constant 0 : index
      %c0_14 = arith.constant 0 : index
      %20 = memref.load %arg4[%c0_13, %c0_14] : memref<1x1xf32, #tpu.memory_space<smem>>
      memref.store %19, %arg4[%c0_13, %c0_14] : memref<1x1xf32, #tpu.memory_space<smem>>
    } else {
    }
    return
  }
  func.func @transform_0(%arg0: i32, %arg1: i32) -> (i32, i32) {
    %c1_i32 = arith.constant 1 : i32
    %0 = arith.muli %arg0, %c1_i32 : i32
    %1 = arith.addi %0, %arg1 : i32
    %c0_i32 = arith.constant 0 : i32
    %2 = arith.minsi %1, %c0_i32 : i32
    %c0_i32_0 = arith.constant 0 : i32
    %c0_i32_1 = arith.constant 0 : i32
    return %2, %c0_i32_0 : i32, i32
  }
  func.func @transform_1(%arg0: i32, %arg1: i32) -> (i32, i32) {
    %c1_i32 = arith.constant 1 : i32
    %0 = arith.muli %arg0, %c1_i32 : i32
    %1 = arith.addi %0, %arg1 : i32
    %c0_i32 = arith.constant 0 : i32
    %2 = arith.minsi %1, %c0_i32 : i32
    %c0_i32_0 = arith.constant 0 : i32
    %c0_i32_1 = arith.constant 0 : i32
    return %2, %c0_i32_0 : i32, i32
  }
  func.func @transform_2(%arg0: i32, %arg1: i32) -> (i32, i32) {
    %c0_i32 = arith.constant 0 : i32
    %c0_i32_0 = arith.constant 0 : i32
    return %arg0, %c0_i32 : i32, i32
  }
}

</mosaic_0001>

<llo_original>
// kernel: tpu_custom_call.1
$region0: #{tpu_custom_call.1}
  #allocation0 [shape = 'u32[]', space=smem, size = 0x4, offset = 0x4, fixed_abs, tag = 'smem constant byte address 0x4 - core index']
  #allocation1 [shape = 'u32[144,128]{1,0:T(1,128)}', space=vmem, size = 0x12000, scoped, tag = 'internal scratch']
  #allocation2 [shape = 'f32[8,128]{1,0:T(8,128)}', space=vmem, size = 0x1000, scoped, tag = 'scratch operand']
  %s0 = inlined_call_operand.hbm [shape: f32[16,128], index: 0, kind: input, shape index: {}]
  %s1 = inlined_call_operand.hbm [shape: f32[16,128], index: 1, kind: input, shape index: {}]
  %s2 = inlined_call_operand.hbm [shape: f32[1,1], index: 2, kind: output, shape index: {}]
  %s3 = sld [smem:[#allocation0]]
  $region34: #{tpu_custom_call.1} parent=0
    _
  %s5 = ssub.s32 1, %s3
  %s6 = scalar_select 0, %s5, %s3
  $region1: #{tpu_custom_call.1} parent=0
    #allocation3 [shape = 'u8[8192]{0}', space=vmem, size = 0x2000, scoped, tag = 'input window, operand 0, single buffered']
    #allocation4 [shape = 's32[1]{0}', space=sflag, size = 0x4, scoped, tag = 'scoped memory for tpu_custom_call.1']
    #allocation5 [shape = 's32[1]{0}', space=sflag, size = 0x4, scoped, tag = 'scoped memory for tpu_custom_call.1']
    #allocation6 [shape = 'u8[8192]{0}', space=vmem, size = 0x2000, scoped, tag = 'input window, operand 1, single buffered']
    #allocation7 [shape = 's32[1]{0}', space=sflag, size = 0x4, scoped, tag = 'scoped memory for tpu_custom_call.1']
    #allocation8 [shape = 'u8[512]{0}', space=smem, size = 0x200, scoped, tag = 'output window, operand 0, single buffered']
    %7 = vsyncpa [#allocation4], 0
    %8 = vsyncpa [#allocation7], 0
    %9 = vsyncpa [#allocation5], 0
    // Predicated region
    $region2: #{tpu_custom_call.1} parent=1 // pred_check
      _
    $region3: #{tpu_custom_call.1} parent=1 // pred_check_branch
      %11 = sbr.rel (0) target = $region5
    $region4: #{tpu_custom_call.1} parent=1 // pred_region
      %s12 = sadd.s32 0, 0
      %p13 = scmp.lt.s32.totalorder %s12, 0
      %s14 = scalar_select %p13, %s12, 0
      %s15 = smul.u32 2, %s14
      %s17 = ssub.s32 256, 256
      %18 = vsyncadd [#allocation4], %s17
      %s19 = smul.addr %s15, 128
      %s20 = scalar_lea.hbm %s0, %s19
      %s21 = sshll.u32 [#allocation3], 4
      %s22 = int_to_ptr.vmem [resolvable:$true] %s21
      %27 = dma.hbm_to_vmem [thread:$0]  %s20, 256, %s22, [#allocation4], 128, 128, 8
    $region5: #{tpu_custom_call.1} parent=1 // pred_fallthru
      _
    // Predicated region
    $region6: #{tpu_custom_call.1} parent=1 // pred_check
      _
    $region7: #{tpu_custom_call.1} parent=1 // pred_check_branch
      %29 = sbr.rel (0) target = $region9
    $region8: #{tpu_custom_call.1} parent=1 // pred_region
      %s30 = sadd.s32 0, 0
      %p31 = scmp.lt.s32.totalorder %s30, 0
      %s32 = scalar_select %p31, %s30, 0
      %s33 = smul.u32 2, %s32
      %s35 = ssub.s32 256, 256
      %36 = vsyncadd [#allocation7], %s35
      %s37 = smul.addr %s33, 128
      %s38 = scalar_lea.hbm %s1, %s37
      %s39 = sshll.u32 [#allocation6], 4
      %s40 = int_to_ptr.vmem [resolvable:$true] %s39
      %45 = dma.hbm_to_vmem [thread:$0]  %s38, 256, %s40, [#allocation7], 128, 128, 8
    $region9: #{tpu_custom_call.1} parent=1 // pred_fallthru
      _
    // Predicated region
    $region10: #{tpu_custom_call.1} parent=1 // pred_check
      _
    $region11: #{tpu_custom_call.1} parent=1 // pred_check_branch
      %47 = sbr.rel (0) target = $region13
    $region12: #{tpu_custom_call.1} parent=1 // pred_region
      %48 = dma.done [#allocation4], 256
    $region13: #{tpu_custom_call.1} parent=1 // pred_fallthru
      _
    // Predicated region
    $region14: #{tpu_custom_call.1} parent=1 // pred_check
      _
    $region15: #{tpu_custom_call.1} parent=1 // pred_check_branch
      %50 = sbr.rel (0) target = $region17
    $region16: #{tpu_custom_call.1} parent=1 // pred_region
      %51 = dma.done [#allocation7], 256
    $region17: #{tpu_custom_call.1} parent=1 // pred_fallthru
      _
    %s52 = sadd.s32 0, 0
    %p53 = scmp.lt.s32.totalorder %s52, 0
    %s54 = scalar_select %p53, %s52, 0
    %s55 = smul.u32 2, %s54
    %s56 = sadd.s32 0, 0
    %p57 = scmp.lt.s32.totalorder %s56, 0
    %s58 = scalar_select %p57, %s56, 0
    %s59 = smul.u32 2, %s58
    %p60 = scmp.eq.s32.totalorder 0, 0
    // Predicated region
    $region18: #{tpu_custom_call.1} parent=1 // pred_check
      %p61 = pneg %p60
    $region19: #{tpu_custom_call.1} parent=1 // pred_check_branch
      %63 = sbr.rel (%p61) target = $region21
    $region20: #{tpu_custom_call.1} parent=1 // pred_region
      %64 = vst [vmem:[#allocation2] sm:$0xff] 0.0
    $region21: #{tpu_custom_call.1} parent=1 // pred_fallthru
      _
    %v65 = vld [vmem:[#allocation3] sm:$0xff]
    %v66 = vld [vmem:[#allocation3 + $0x8] sm:$0xff]
    %v67 = vld [vmem:[#allocation6] sm:$0xff]
    %v68 = vld [vmem:[#allocation6 + $0x8] sm:$0xff]
    %v69 = vsub.f32 %v65, %v67
    %v70 = vsub.f32 %v66, %v68
    %v71 = vmul.f32 %v69, %v69
    %v72 = vmul.f32 %v70, %v70
    %v73 = vld [vmem:[#allocation2] sm:$0xff]
    %v74 = vadd.f32 %v71, %v72
    %v75 = vadd.f32 %v73, %v74
    %76 = vst [vmem:[#allocation2] sm:$0xff] %v75
    // Predicated region
    $region22: #{tpu_custom_call.1} parent=1 // pred_check
      %p77 = pneg %p60
    $region23: #{tpu_custom_call.1} parent=1 // pred_check_branch
      %79 = sbr.rel (%p77) target = $region25
    $region24: #{tpu_custom_call.1} parent=1 // pred_region
      %v80 = vld [vmem:[#allocation2] sm:$0xff]
      %81 = vadd.xlane.f32.xlu0 %v80
      %v82 = vpop.xlane.xlu0 %81
      %v83 = vrot.slane %v82, 4
      %v84 = vadd.f32 %v82, %v83
      %v85 = vrot.slane %v84, 2
      %v86 = vadd.f32 %v84, %v85
      %v87 = vrot.slane %v86, 1
      %v88 = vadd.f32 %v86, %v87
      %s89 = vtos %v88
      %s90 = scalar_lea.smem [#allocation8], 0
      %91 = sst [smem:[%s90]] %s89
    $region25: #{tpu_custom_call.1} parent=1 // pred_fallthru
      _
    // Predicated region
    $region26: #{tpu_custom_call.1} parent=1 // pred_check
      _
    $region27: #{tpu_custom_call.1} parent=1 // pred_check_branch
      %93 = sbr.rel (0) target = $region29
    $region28: #{tpu_custom_call.1} parent=1 // pred_region
      %s95 = ssub.s32 16, 16
      %96 = vsyncadd [#allocation5], %s95
      %99 = dma.smem_to_hbm [#allocation8], 16, %s2, [#allocation5]
    $region29: #{tpu_custom_call.1} parent=1 // pred_fallthru
      _
    // Predicated region
    $region30: #{tpu_custom_call.1} parent=1 // pred_check
      _
    $region31: #{tpu_custom_call.1} parent=1 // pred_check_branch
      %101 = sbr.rel (0) target = $region33
    $region32: #{tpu_custom_call.1} parent=1 // pred_region
      %102 = dma.done [#allocation5], 16
    $region33: #{tpu_custom_call.1} parent=1 // pred_fallthru
      _
    %103 = sfence
    %104 = vsyncpa [#allocation4], 1
    %105 = vsyncpa [#allocation7], 1
    %106 = vsyncpa [#allocation5], 1

</llo_original>
